<compile_context>
chip_gen: v6e
topology: v6e:2x2x1
jax: 0.10.0
libtpu: 0.0.40
codegen_flags: <defaults>
</compile_context>

<pallas_src>
import math

import jax
import jax.numpy as jnp
from jax.experimental import pallas as pl
from jax.experimental.pallas import tpu as pltpu

# Module hyper-parameters (consistent with the module's params dict).
TW = 50          # params['tw']
CL = 40          # params['cl']
NUM = 9          # num == len(permutation)
BATCH = 2


def _corr_kernel(x_ref, t_ref, e_ref, f_ref, s_ref, o_ref):
    # x_ref: (bb*tw, num)      raw x rows for the bb batches of this step
    # t_ref: (bb*tw, num*cl)   raw t rows (lane-dense flat layout)
    # e_ref: (num, num*cl)     E[n, m] = 1  iff  m // cl == n   (x broadcast)
    # f_ref: (num*cl, cl)      F[m, c] = 1  iff  m %  cl == c   (mean over num)
    # s_ref: (bb, bb*tw)       S[b, r] = 1  iff  r // tw == b   (tw segment sum)
    # o_ref: (1, bb, cl)
    num = x_ref.shape[1]

    xf = x_ref[...].astype(jnp.float32)           # (R, num)
    tf = t_ref[...].astype(jnp.float32)           # (R, M)
    E = e_ref[...]
    F = f_ref[...]
    S = s_ref[...]

    # Broadcast x over the cl sub-axis of the flattened (num*cl) lane axis.
    x_bc = jnp.dot(xf, E, preferred_element_type=jnp.float32)         # (R, M)

    # Per-batch reductions over tw as MXU contractions (segment sums via S).
    xt = jnp.dot(S, x_bc * tf, preferred_element_type=jnp.float32)    # (bb, M)
    tt = jnp.dot(S, tf * tf, preferred_element_type=jnp.float32)      # (bb, M)
    xx = jnp.dot(S, xf * xf, preferred_element_type=jnp.float32)      # (bb, num)
    xx_bc = jnp.dot(xx, E, preferred_element_type=jnp.float32)        # (bb, M)

    # corr_xt / sqrt(corr_tt) / sqrt(corr_xx) == corr_xt * rsqrt(corr_tt*corr_xx)
    corr = xt * jax.lax.rsqrt(tt * xx_bc)                             # (bb, M)

    # Mean over num: one more tiny MXU matmul, 1/num folded into the scale.
    out = jnp.dot(corr, F, preferred_element_type=jnp.float32) * (1.0 / num)
    o_ref[0] = out.astype(o_ref.dtype)                                # (bb, cl)


def multi_ch_corr(x, t, *, tw=TW, num=NUM, cl=CL, batch_block=None):
    """x: reshapeable to (B, tw, num); t: reshapeable to (B, tw, num, cl)."""
    M = num * cl

    # Free views only -- no transpose, no host-side dtype upcast.
    x3 = jnp.reshape(x, (-1, tw, num))
    t3 = jnp.reshape(t, (-1, tw, M))
    B = x3.shape[0]

    # Batches per grid step.  Small B -> single step; otherwise a block whose
    # row count bb*tw is sublane(8)-aligned and whose VMEM footprint stays a
    # few MiB (safe for every generation's default scoped VMEM, incl. v7x).
    if batch_block is None:
        bb = B if B <= 16 else 16
    else:
        bb = max(1, min(int(batch_block), B))
    nblk = pl.cdiv(B, bb)
    if nblk > 1 and (bb * tw) % 8 != 0:
        align = 8 // math.gcd(tw, 8)
        bb = ((bb + align - 1) // align) * align
        nblk = pl.cdiv(B, bb)
    Bp = nblk * bb
    if Bp != B:
        # Zero-padded batches produce NaN rows that are sliced off below.
        x3 = jnp.pad(x3, ((0, Bp - B), (0, 0), (0, 0)))
        t3 = jnp.pad(t3, ((0, Bp - B), (0, 0), (0, 0)))

    R = bb * tw
    x2 = jnp.reshape(x3, (Bp * tw, num))   # free view
    t2 = jnp.reshape(t3, (Bp * tw, M))     # free view

    # Constant 0/1 indicator matrices (shape-only => constant-folded under jit;
    # constant index_map => fetched once per core, not per grid step).
    m_ids = jnp.arange(M, dtype=jnp.int32)
    E = (m_ids[None, :] // cl ==
         jnp.arange(num, dtype=jnp.int32)[:, None]).astype(jnp.float32)     # (num, M)
    F = (m_ids[:, None] % cl ==
         jnp.arange(cl, dtype=jnp.int32)[None, :]).astype(jnp.float32)      # (M, cl)
    r_ids = jnp.arange(R, dtype=jnp.int32)
    S = (r_ids[None, :] // tw ==
         jnp.arange(bb, dtype=jnp.int32)[:, None]).astype(jnp.float32)      # (bb, R)

    cost = pl.CostEstimate(
        flops=int(nblk * (2 * R * num * M            # x_bc matmul
                          + 3 * R * M                # elementwise products
                          + 4 * bb * R * M           # two S reductions (M wide)
                          + 2 * bb * R * num         # xx reduction
                          + 2 * bb * num * M         # xx broadcast
                          + 3 * bb * M               # normalization
                          + 2 * bb * M * cl)),       # mean-over-num matmul
        transcendentals=int(Bp * M),
        bytes_accessed=int(x2.size * x2.dtype.itemsize
                           + t2.size * t2.dtype.itemsize
                           + (E.size + F.size + S.size) * 4
                           + Bp * cl * 4),
    )

    # 3-D output (nblk, bb, cl): the block's last two dims equal the full array
    # dims, so any bb is legal, and there is exactly one store per grid step.
    out = pl.pallas_call(
        _corr_kernel,
        out_shape=jax.ShapeDtypeStruct((nblk, bb, cl), jnp.float32),
        grid=(nblk,),
        in_specs=[
            pl.BlockSpec((R, num), lambda i: (i, 0)),
            pl.BlockSpec((R, M), lambda i: (i, 0)),
            pl.BlockSpec((num, M), lambda i: (0, 0)),
            pl.BlockSpec((M, cl), lambda i: (0, 0)),
            pl.BlockSpec((bb, R), lambda i: (0, 0)),
        ],
        out_specs=pl.BlockSpec((1, bb, cl), lambda i: (i, 0, 0)),
        compiler_params=pltpu.CompilerParams(
            dimension_semantics=("parallel",)),
        cost_estimate=cost,
    )(x2, t2, E, F, S)

    return jnp.reshape(out, (Bp, cl))[:B]


def _reference(x, t, *, tw=TW, num=NUM, cl=CL):
    # Pure-JAX mirror of the PyTorch forward, for verification.
    x_ = jnp.reshape(x, (-1, tw, num, 1)).astype(jnp.float32)
    t_ = jnp.reshape(t, (-1, tw, num, cl)).astype(jnp.float32)
    corr_xt = jnp.sum(x_ * t_, axis=1)
    corr_xx = jnp.sum(x_ * x_, axis=1)
    corr_tt = jnp.sum(t_ * t_, axis=1)
    corr = corr_xt / jnp.sqrt(corr_tt) / jnp.sqrt(corr_xx)
    return jnp.mean(corr, axis=1)


if __name__ == "__main__":
    key = jax.random.PRNGKey(0)
    kx, kt = jax.random.split(key)
    # Deterministic example inputs (module has no learned parameters).
    x = jax.random.normal(kx, (BATCH, TW, NUM), dtype=jnp.float32)
    t = jax.random.normal(kt, (BATCH, TW, NUM, CL), dtype=jnp.float32) + 0.1

    out = jax.block_until_ready(multi_ch_corr(x, t))
    ref = jax.block_until_ready(_reference(x, t))

    assert out.shape == (BATCH, CL)
    assert jnp.allclose(out, ref, atol=1e-4, rtol=1e-4)
    print("KERNEL_OK")
</pallas_src>

<mosaic_0001>
module attributes {stable_mosaic.version = 11 : i64} {
  func.func @_corr_kernel(%arg0: i32, %arg1: memref<100x9xf32, #tpu.memory_space<vmem>>, %arg2: memref<100x360xf32, #tpu.memory_space<vmem>>, %arg3: memref<9x360xf32, #tpu.memory_space<vmem>>, %arg4: memref<360x40xf32, #tpu.memory_space<vmem>>, %arg5: memref<2x100xf32, #tpu.memory_space<vmem>>, %arg6: memref<1x2x40xf32, #tpu.memory_space<vmem>>) attributes {dimension_semantics = [#tpu.dimension_semantics<parallel>], iteration_bounds = array<i64: 1>, scalar_prefetch = 0 : i64, scratch_operands = 0 : i64, tpu.core_type = #tpu.core_type<tc>, window_params = [{transform_indices = @transform_0, window_bounds = array<i64: 100, 9>}, {transform_indices = @transform_1, window_bounds = array<i64: 100, 360>}, {pipeline_mode = #tpu.pipeline_mode<synchronous>, transform_indices = @transform_2, window_bounds = array<i64: 9, 360>}, {pipeline_mode = #tpu.pipeline_mode<synchronous>, transform_indices = @transform_3, window_bounds = array<i64: 360, 40>}, {pipeline_mode = #tpu.pipeline_mode<synchronous>, transform_indices = @transform_4, window_bounds = array<i64: 2, 100>}, {transform_indices = @transform_5, window_bounds = array<i64: 1, 2, 40>}]} {
    %c0 = arith.constant 0 : index
    %c0_0 = arith.constant 0 : index
    %0 = vector.load %arg1[%c0, %c0_0] : memref<100x9xf32, #tpu.memory_space<vmem>>, vector<100x9xf32>
    %c0_1 = arith.constant 0 : index
    %c0_2 = arith.constant 0 : index
    %1 = vector.load %arg2[%c0_1, %c0_2] : memref<100x360xf32, #tpu.memory_space<vmem>>, vector<100x360xf32>
    %c0_3 = arith.constant 0 : index
    %c0_4 = arith.constant 0 : index
    %2 = vector.load %arg3[%c0_3, %c0_4] : memref<9x360xf32, #tpu.memory_space<vmem>>, vector<9x360xf32>
    %c0_5 = arith.constant 0 : index
    %c0_6 = arith.constant 0 : index
    %3 = vector.load %arg4[%c0_5, %c0_6] : memref<360x40xf32, #tpu.memory_space<vmem>>, vector<360x40xf32>
    %c0_7 = arith.constant 0 : index
    %c0_8 = arith.constant 0 : index
    %4 = vector.load %arg5[%c0_7, %c0_8] : memref<2x100xf32, #tpu.memory_space<vmem>>, vector<2x100xf32>
    %cst = arith.constant dense<0.000000e+00> : vector<100x360xf32>
    %5 = tpu.matmul %0, %2, %cst {dimension_numbers = #tpu.dot_dimension_numbers<[1], [0], [0], [1], [0, 0, 1, 1], [], []>} : vector<100x9xf32>, vector<9x360xf32>, vector<100x360xf32> -> vector<100x360xf32>
    %6 = arith.mulf %5, %1 : vector<100x360xf32>
    %cst_9 = arith.constant dense<0.000000e+00> : vector<2x360xf32>
    %7 = tpu.matmul %4, %6, %cst_9 {dimension_numbers = #tpu.dot_dimension_numbers<[1], [0], [0], [1], [0, 0, 1, 1], [], []>} : vector<2x100xf32>, vector<100x360xf32>, vector<2x360xf32> -> vector<2x360xf32>
    %8 = arith.mulf %1, %1 : vector<100x360xf32>
    %cst_10 = arith.constant dense<0.000000e+00> : vector<2x360xf32>
    %9 = tpu.matmul %4, %8, %cst_10 {dimension_numbers = #tpu.dot_dimension_numbers<[1], [0], [0], [1], [0, 0, 1, 1], [], []>} : vector<2x100xf32>, vector<100x360xf32>, vector<2x360xf32> -> vector<2x360xf32>
    %10 = arith.mulf %0, %0 : vector<100x9xf32>
    %cst_11 = arith.constant dense<0.000000e+00> : vector<2x9xf32>
    %11 = tpu.matmul %4, %10, %cst_11 {dimension_numbers = #tpu.dot_dimension_numbers<[1], [0], [0], [1], [0, 0, 1, 1], [], []>} : vector<2x100xf32>, vector<100x9xf32>, vector<2x9xf32> -> vector<2x9xf32>
    %cst_12 = arith.constant dense<0.000000e+00> : vector<2x360xf32>
    %12 = tpu.matmul %11, %2, %cst_12 {dimension_numbers = #tpu.dot_dimension_numbers<[1], [0], [0], [1], [0, 0, 1, 1], [], []>} : vector<2x9xf32>, vector<9x360xf32>, vector<2x360xf32> -> vector<2x360xf32>
    %13 = arith.mulf %9, %12 : vector<2x360xf32>
    %14 = math.rsqrt %13 : vector<2x360xf32>
    %15 = arith.mulf %7, %14 : vector<2x360xf32>
    %cst_13 = arith.constant dense<0.000000e+00> : vector<2x40xf32>
    %16 = tpu.matmul %15, %3, %cst_13 {dimension_numbers = #tpu.dot_dimension_numbers<[1], [0], [0], [1], [0, 0, 1, 1], [], []>} : vector<2x360xf32>, vector<360x40xf32>, vector<2x40xf32> -> vector<2x40xf32>
    %cst_14 = arith.constant 0.111111112 : f32
    %17 = vector.broadcast %cst_14 : f32 to vector<2x40xf32>
    %18 = arith.mulf %16, %17 : vector<2x40xf32>
    %c0_15 = arith.constant 0 : index
    %c0_16 = arith.constant 0 : index
    %c0_17 = arith.constant 0 : index
    %19 = vector.load %arg6[%c0_15, %c0_16, %c0_17] : memref<1x2x40xf32, #tpu.memory_space<vmem>>, vector<1x2x40xf32>
    %20 = vector.shape_cast %19 : vector<1x2x40xf32> to vector<2x40xf32>
    %21 = vector.shape_cast %18 : vector<2x40xf32> to vector<1x2x40xf32>
    tpu.vector_store %arg6[%c0_15, %c0_16, %c0_17], %21 {strides = array<i32>} : memref<1x2x40xf32, #tpu.memory_space<vmem>>, vector<1x2x40xf32>,
    return
  }
  func.func @transform_0(%arg0: i32) -> (i32, i32) {
    %c0_i32 = arith.constant 0 : i32
    %c0_i32_0 = arith.constant 0 : i32
    return %arg0, %c0_i32 : i32, i32
  }
  func.func @transform_1(%arg0: i32) -> (i32, i32) {
    %c0_i32 = arith.constant 0 : i32
    %c0_i32_0 = arith.constant 0 : i32
    return %arg0, %c0_i32 : i32, i32
  }
  func.func @transform_2(%arg0: i32) -> (i32, i32) {
    %c0_i32 = arith.constant 0 : i32
    %c0_i32_0 = arith.constant 0 : i32
    %c0_i32_1 = arith.constant 0 : i32
    return %c0_i32, %c0_i32_0 : i32, i32
  }
  func.func @transform_3(%arg0: i32) -> (i32, i32) {
    %c0_i32 = arith.constant 0 : i32
    %c0_i32_0 = arith.constant 0 : i32
    %c0_i32_1 = arith.constant 0 : i32
    return %c0_i32, %c0_i32_0 : i32, i32
  }
  func.func @transform_4(%arg0: i32) -> (i32, i32) {
    %c0_i32 = arith.constant 0 : i32
    %c0_i32_0 = arith.constant 0 : i32
    %c0_i32_1 = arith.constant 0 : i32
    return %c0_i32, %c0_i32_0 : i32, i32
  }
  func.func @transform_5(%arg0: i32) -> (i32, i32, i32) {
    %c0_i32 = arith.constant 0 : i32
    %c0_i32_0 = arith.constant 0 : i32
    %c0_i32_1 = arith.constant 0 : i32
    return %arg0, %c0_i32, %c0_i32_0 : i32, i32, i32
  }
}

</mosaic_0001>

<llo_original>
// kernel: tpu_custom_call.1
$region0: #{tpu_custom_call.1}
  #allocation0 [shape = 'u32[]', space=smem, size = 0x4, offset = 0x4, fixed_abs, tag = 'smem constant byte address 0x4 - core index']
  #allocation1 [shape = 'u32[144,128]{1,0:T(1,128)}', space=vmem, size = 0x12000, scoped, tag = 'internal scratch']
  %s0 = inlined_call_operand.vmem [shape: f32[100,9], index: 0, kind: input, shape index: {}]
  %s1 = inlined_call_operand.vmem [shape: f32[100,360], index: 1, kind: input, shape index: {}]
  %s2 = inlined_call_operand.vmem [shape: f32[9,360], index: 2, kind: input, shape index: {}]
  %s3 = inlined_call_operand.vmem [shape: f32[360,40], index: 3, kind: input, shape index: {}]
  %s4 = inlined_call_operand.vmem [shape: f32[2,100], index: 4, kind: input, shape index: {}]
  %s5 = inlined_call_operand.hbm [shape: f32[1,2,40], index: 5, kind: output, shape index: {}]
  %s6 = sld [smem:[#allocation0]]
  $region30: #{tpu_custom_call.1} parent=0
    _
  %s8 = ssub.s32 1, %s6
  %s9 = scalar_select 0, %s8, %s6
  $region1: #{tpu_custom_call.1} parent=0
    #allocation2 [shape = 'u8[1024]{0}', space=vmem, size = 0x400, scoped, tag = 'output window, operand 0, single buffered']
    #allocation3 [shape = 's32[1]{0}', space=sflag, size = 0x4, scoped, tag = 'scoped memory for tpu_custom_call.1']
    %10 = vsyncpa [#allocation3], 0
    // Predicated region
    $region2: #{tpu_custom_call.1} parent=1 // pred_check
      _
    $region3: #{tpu_custom_call.1} parent=1 // pred_check_branch
      %12 = sbr.rel (0) target = $region5
    $region4: #{tpu_custom_call.1} parent=1 // pred_region
      _
    $region5: #{tpu_custom_call.1} parent=1 // pred_fallthru
      _
    // Predicated region
    $region6: #{tpu_custom_call.1} parent=1 // pred_check
      _
    $region7: #{tpu_custom_call.1} parent=1 // pred_check_branch
      %14 = sbr.rel (0) target = $region9
    $region8: #{tpu_custom_call.1} parent=1 // pred_region
      _
    $region9: #{tpu_custom_call.1} parent=1 // pred_fallthru
      _
    // Predicated region
    $region10: #{tpu_custom_call.1} parent=1 // pred_check
      _
    $region11: #{tpu_custom_call.1} parent=1 // pred_check_branch
      %16 = sbr.rel (0) target = $region13
    $region12: #{tpu_custom_call.1} parent=1 // pred_region
      _
    $region13: #{tpu_custom_call.1} parent=1 // pred_fallthru
      _
    // Predicated region
    $region14: #{tpu_custom_call.1} parent=1 // pred_check
      _
    $region15: #{tpu_custom_call.1} parent=1 // pred_check_branch
      %18 = sbr.rel (0) target = $region17
    $region16: #{tpu_custom_call.1} parent=1 // pred_region
      _
    $region17: #{tpu_custom_call.1} parent=1 // pred_fallthru
      _
    // Predicated region
    $region18: #{tpu_custom_call.1} parent=1 // pred_check
      _
    $region19: #{tpu_custom_call.1} parent=1 // pred_check_branch
      %20 = sbr.rel (0) target = $region21
    $region20: #{tpu_custom_call.1} parent=1 // pred_region
      _
    $region21: #{tpu_custom_call.1} parent=1 // pred_fallthru
      _
    %v21 = vld [vmem:[%s0] sm:$0xff]
    %v22 = vld [vmem:[%s0 + $0x8] sm:$0xff]
    %v23 = vld [vmem:[%s0 + $0x10] sm:$0xff]
    %v24 = vld [vmem:[%s0 + $0x18] sm:$0xff]
    %v25 = vld [vmem:[%s0 + $0x20] sm:$0xff]
    %v26 = vld [vmem:[%s0 + $0x28] sm:$0xff]
    %v27 = vld [vmem:[%s0 + $0x30] sm:$0xff]
    %v28 = vld [vmem:[%s0 + $0x38] sm:$0xff]
    %v29 = vld [vmem:[%s0 + $0x40] sm:$0xff]
    %v30 = vld [vmem:[%s0 + $0x48] sm:$0xff]
    %v31 = vld [vmem:[%s0 + $0x50] sm:$0xff]
    %v32 = vld [vmem:[%s0 + $0x58] sm:$0xff]
    %v33 = vld [vmem:[%s0 + $0x60] sm:$0xf]
    %v34 = vld [vmem:[%s1] sm:$0xff]
    %v35 = vld [vmem:[%s1 + $0x8] sm:$0xff]
    %v36 = vld [vmem:[%s1 + $0x10] sm:$0xff]
    %v37 = vld [vmem:[%s1 + $0x18] sm:$0xff]
    %v38 = vld [vmem:[%s1 + $0x20] sm:$0xff]
    %v39 = vld [vmem:[%s1 + $0x28] sm:$0xff]
    %v40 = vld [vmem:[%s1 + $0x30] sm:$0xff]
    %v41 = vld [vmem:[%s1 + $0x38] sm:$0xff]
    %v42 = vld [vmem:[%s1 + $0x40] sm:$0xff]
    %v43 = vld [vmem:[%s1 + $0x48] sm:$0xff]
    %v44 = vld [vmem:[%s1 + $0x50] sm:$0xff]
    %v45 = vld [vmem:[%s1 + $0x58] sm:$0xff]
    %v46 = vld [vmem:[%s1 + $0x60] sm:$0xff]
    %v47 = vld [vmem:[%s1 + $0x68] sm:$0xff]
    %v48 = vld [vmem:[%s1 + $0x70] sm:$0xff]
    %v49 = vld [vmem:[%s1 + $0x78] sm:$0xff]
    %v50 = vld [vmem:[%s1 + $0x80] sm:$0xff]
    %v51 = vld [vmem:[%s1 + $0x88] sm:$0xff]
    %v52 = vld [vmem:[%s1 + $0x90] sm:$0xff]
    %v53 = vld [vmem:[%s1 + $0x98] sm:$0xff]
    %v54 = vld [vmem:[%s1 + $0xa0] sm:$0xff]
    %v55 = vld [vmem:[%s1 + $0xa8] sm:$0xff]
    %v56 = vld [vmem:[%s1 + $0xb0] sm:$0xff]
    %v57 = vld [vmem:[%s1 + $0xb8] sm:$0xff]
    %v58 = vld [vmem:[%s1 + $0xc0] sm:$0xff]
    %v59 = vld [vmem:[%s1 + $0xc8] sm:$0xff]
    %v60 = vld [vmem:[%s1 + $0xd0] sm:$0xff]
    %v61 = vld [vmem:[%s1 + $0xd8] sm:$0xff]
    %v62 = vld [vmem:[%s1 + $0xe0] sm:$0xff]
    %v63 = vld [vmem:[%s1 + $0xe8] sm:$0xff]
    %v64 = vld [vmem:[%s1 + $0xf0] sm:$0xff]
    %v65 = vld [vmem:[%s1 + $0xf8] sm:$0xff]
    %v66 = vld [vmem:[%s1 + $0x100] sm:$0xff]
    %v67 = vld [vmem:[%s1 + $0x108] sm:$0xff]
    %v68 = vld [vmem:[%s1 + $0x110] sm:$0xff]
    %v69 = vld [vmem:[%s1 + $0x118] sm:$0xff]
    %v70 = vld [vmem:[%s1 + $0x120] sm:$0xf]
    %v71 = vld [vmem:[%s1 + $0x128] sm:$0xf]
    %v72 = vld [vmem:[%s1 + $0x130] sm:$0xf]
    %v73 = vld [vmem:[%s2] sm:$0xff]
    %v74 = vld [vmem:[%s2 + $0x8] sm:$0xff]
    %v75 = vld [vmem:[%s2 + $0x10] sm:$0xff]
    %v76 = vld [vmem:[%s2 + $0x18] sm:$0x1]
    %v77 = vld [vmem:[%s2 + $0x20] sm:$0x1]
    %v78 = vld [vmem:[%s2 + $0x28] sm:$0x1]
    %v79 = vld [vmem:[%s3] sm:$0xff]
    %v80 = vld [vmem:[%s3 + $0x8] sm:$0xff]
    %v81 = vld [vmem:[%s3 + $0x10] sm:$0xff]
    %v82 = vld [vmem:[%s3 + $0x18] sm:$0xff]
    %v83 = vld [vmem:[%s3 + $0x20] sm:$0xff]
    %v84 = vld [vmem:[%s3 + $0x28] sm:$0xff]
    %v85 = vld [vmem:[%s3 + $0x30] sm:$0xff]
    %v86 = vld [vmem:[%s3 + $0x38] sm:$0xff]
    %v87 = vld [vmem:[%s3 + $0x40] sm:$0xff]
    %v88 = vld [vmem:[%s3 + $0x48] sm:$0xff]
    %v89 = vld [vmem:[%s3 + $0x50] sm:$0xff]
    %v90 = vld [vmem:[%s3 + $0x58] sm:$0xff]
    %v91 = vld [vmem:[%s3 + $0x60] sm:$0xff]
    %v92 = vld [vmem:[%s3 + $0x68] sm:$0xff]
    %v93 = vld [vmem:[%s3 + $0x70] sm:$0xff]
    %v94 = vld [vmem:[%s3 + $0x78] sm:$0xff]
    %v95 = vld [vmem:[%s3 + $0x80] sm:$0xff]
    %v96 = vld [vmem:[%s3 + $0x88] sm:$0xff]
    %v97 = vld [vmem:[%s3 + $0x90] sm:$0xff]
    %v98 = vld [vmem:[%s3 + $0x98] sm:$0xff]
    %v99 = vld [vmem:[%s3 + $0xa0] sm:$0xff]
    %v100 = vld [vmem:[%s3 + $0xa8] sm:$0xff]
    %v101 = vld [vmem:[%s3 + $0xb0] sm:$0xff]
    %v102 = vld [vmem:[%s3 + $0xb8] sm:$0xff]
    %v103 = vld [vmem:[%s3 + $0xc0] sm:$0xff]
    %v104 = vld [vmem:[%s3 + $0xc8] sm:$0xff]
    %v105 = vld [vmem:[%s3 + $0xd0] sm:$0xff]
    %v106 = vld [vmem:[%s3 + $0xd8] sm:$0xff]
    %v107 = vld [vmem:[%s3 + $0xe0] sm:$0xff]
    %v108 = vld [vmem:[%s3 + $0xe8] sm:$0xff]
    %v109 = vld [vmem:[%s3 + $0xf0] sm:$0xff]
    %v110 = vld [vmem:[%s3 + $0xf8] sm:$0xff]
    %v111 = vld [vmem:[%s3 + $0x100] sm:$0xff]
    %v112 = vld [vmem:[%s3 + $0x108] sm:$0xff]
    %v113 = vld [vmem:[%s3 + $0x110] sm:$0xff]
    %v114 = vld [vmem:[%s3 + $0x118] sm:$0xff]
    %v115 = vld [vmem:[%s3 + $0x120] sm:$0xff]
    %v116 = vld [vmem:[%s3 + $0x128] sm:$0xff]
    %v117 = vld [vmem:[%s3 + $0x130] sm:$0xff]
    %v118 = vld [vmem:[%s3 + $0x138] sm:$0xff]
    %v119 = vld [vmem:[%s3 + $0x140] sm:$0xff]
    %v120 = vld [vmem:[%s3 + $0x148] sm:$0xff]
    %v121 = vld [vmem:[%s3 + $0x150] sm:$0xff]
    %v122 = vld [vmem:[%s3 + $0x158] sm:$0xff]
    %v123 = vld [vmem:[%s3 + $0x160] sm:$0xff]
    %v124 = vld [vmem:[%s4] sm:$0x3]
    %vm125 = vcmask 72704
    %v127 = vsel %vm125, %v21, 0
    %v130 = vsel %vm125, %v22, 0
    %v133 = vsel %vm125, %v23, 0
    %v136 = vsel %vm125, %v24, 0
    %v139 = vsel %vm125, %v25, 0
    %v142 = vsel %vm125, %v26, 0
    %v145 = vsel %vm125, %v27, 0
    %v148 = vsel %vm125, %v28, 0
    %v151 = vsel %vm125, %v29, 0
    %v154 = vsel %vm125, %v30, 0
    %v157 = vsel %vm125, %v31, 0
    %v160 = vsel %vm125, %v32, 0
    %v163 = vsel %vm125, %v33, 0
    %vm165 = vcmask 1040384
    %v167 = vsel %vm165, %v76, 0
    %v170 = vsel %vm165, %v77, 0
    %v173 = vsel %vm165, %v78, 0
    %175 = vmatprep.subr.mxu0 0.0
    %176 = vmatpush1.msra.mxu0 0.0
    %177 = vmatprep.subr.mxu0 0.0
    %178 = vmatpush1.msra.mxu0 0.0
    %179 = vmatprep.subr.mxu0 0.0
    %180 = vmatpush1.msra.mxu0 0.0
    %181 = vmatprep.subr.mxu0 0.0
    %182 = vmatpush1.msra.mxu0 0.0
    %183 = vmatprep.subr.mxu0 0.0
    %184 = vmatpush1.msra.mxu0 0.0
    %185 = vmatprep.subr.mxu0 0.0
    %186 = vmatpush1.msra.mxu0 0.0
    %187 = vmatprep.subr.mxu0 0.0
    %188 = vmatpush1.msra.mxu0 0.0
    %189 = vmatprep.subr.mxu0 0.0
    %190 = vmatpush1.msra.mxu0 0.0
    %191 = vmatprep.subr.mxu0 0.0
    %192 = vmatpush1.msra.mxu0 0.0
    %193 = vmatprep.subr.mxu0 0.0
    %194 = vmatpush1.msra.mxu0 0.0
    %195 = vmatprep.subr.mxu0 0.0
    %196 = vmatpush1.msra.mxu0 0.0
    %197 = vmatprep.subr.mxu0 0.0
    %198 = vmatpush1.msra.mxu0 0.0
    %199 = vmatprep.subr.mxu0 0.0
    %200 = vmatpush1.msra.mxu0 0.0
    %201 = vmatprep.subr.mxu0 0.0
    %202 = vmatpush1.msra.mxu0 0.0
    %203 = vmatprep.subr.mxu0 %v170
    %204 = vmatpush1.msra.mxu0 %v167
    %205 = vmatprep.subr.mxu0 %v74
    %206 = vmatpush1.msra.mxu0 %v73
    %207 = vmatprep.subr.mxu0 0.0
    %208 = vmatpush2.msra.mxu0 0.0
    %209 = vmatprep.subr.mxu0 0.0
    %210 = vmatpush2.msra.mxu0 0.0
    %211 = vmatprep.subr.mxu0 0.0
    %212 = vmatpush2.msra.mxu0 0.0
    %213 = vmatprep.subr.mxu0 0.0
    %214 = vmatpush2.msra.mxu0 0.0
    %215 = vmatprep.subr.mxu0 0.0
    %216 = vmatpush2.msra.mxu0 0.0
    %217 = vmatprep.subr.mxu0 0.0
    %218 = vmatpush2.msra.mxu0 0.0
    %219 = vmatprep.subr.mxu0 0.0
    %220 = vmatpush2.msra.mxu0 0.0
    %221 = vmatprep.subr.mxu0 0.0
    %222 = vmatpush2.msra.mxu0 0.0
    %223 = vmatprep.subr.mxu0 0.0
    %224 = vmatpush2.msra.mxu0 0.0
    %225 = vmatprep.subr.mxu0 0.0
    %226 = vmatpush2.msra.mxu0 0.0
    %227 = vmatprep.subr.mxu0 0.0
    %228 = vmatpush2.msra.mxu0 0.0
    %229 = vmatprep.subr.mxu0 0.0
    %230 = vmatpush2.msra.mxu0 0.0
    %231 = vmatprep.subr.mxu0 0.0
    %232 = vmatpush2.msra.mxu0 0.0
    %233 = vmatprep.subr.mxu0 0.0
    %234 = vmatpush2.msra.mxu0 0.0
    %235 = vmatprep.subr.mxu0 0.0
    %236 = vmatpush2.msra.mxu0 0.0
    %237 = vmatprep.subr.mxu0 0.0
    %238 = vmatpush2.msra.mxu0 0.0
    %239 = vmatprep.mubr.f32.mxu0 0.0
    %240 = vmatmul.mubr.f32.gmra.mxu0 %v127
    %v241 = vpop.f32.mrf.mxu0
    %v242 = vadd.f32 0.0, %v241
    %v243 = vpop.f32.mrf.mxu0
    %v244 = vadd.f32 0.0, %v243
    %245 = vmatprep.mubr.f32.mxu0 0.0
    %246 = vmatmul.mubr.f32.gmra.mxu0 %v130
    %v247 = vpop.f32.mrf.mxu0
    %v248 = vadd.f32 0.0, %v247
    %v249 = vpop.f32.mrf.mxu0
    %v250 = vadd.f32 0.0, %v249
    %251 = vmatprep.mubr.f32.mxu0 0.0
    %252 = vmatmul.mubr.f32.gmra.mxu0 %v133
    %v253 = vpop.f32.mrf.mxu0
    %v254 = vadd.f32 0.0, %v253
    %v255 = vpop.f32.mrf.mxu0
    %v256 = vadd.f32 0.0, %v255
    %257 = vmatprep.mubr.f32.mxu0 0.0
    %258 = vmatmul.mubr.f32.gmra.mxu0 %v136
    %v259 = vpop.f32.mrf.mxu0
    %v260 = vadd.f32 0.0, %v259
    %v261 = vpop.f32.mrf.mxu0
    %v262 = vadd.f32 0.0, %v261
    %263 = vmatprep.mubr.f32.mxu0 0.0
    %264 = vmatmul.mubr.f32.gmra.mxu0 %v139
    %v265 = vpop.f32.mrf.mxu0
    %v266 = vadd.f32 0.0, %v265
    %v267 = vpop.f32.mrf.mxu0
    %v268 = vadd.f32 0.0, %v267
    %269 = vmatprep.mubr.f32.mxu0 0.0
    %270 = vmatmul.mubr.f32.gmra.mxu0 %v142
    %v271 = vpop.f32.mrf.mxu0
    %v272 = vadd.f32 0.0, %v271
    %v273 = vpop.f32.mrf.mxu0
    %v274 = vadd.f32 0.0, %v273
    %275 = vmatprep.mubr.f32.mxu0 0.0
    %276 = vmatmul.mubr.f32.gmra.mxu0 %v145
    %v277 = vpop.f32.mrf.mxu0
    %v278 = vadd.f32 0.0, %v277
    %v279 = vpop.f32.mrf.mxu0
    %v280 = vadd.f32 0.0, %v279
    %281 = vmatprep.mubr.f32.mxu0 0.0
    %282 = vmatmul.mubr.f32.gmra.mxu0 %v148
    %v283 = vpop.f32.mrf.mxu0
    %v284 = vadd.f32 0.0, %v283
    %v285 = vpop.f32.mrf.mxu0
    %v286 = vadd.f32 0.0, %v285
    %287 = vmatprep.mubr.f32.mxu0 0.0
    %288 = vmatmul.mubr.f32.gmra.mxu0 %v151
    %v289 = vpop.f32.mrf.mxu0
    %v290 = vadd.f32 0.0, %v289
    %v291 = vpop.f32.mrf.mxu0
    %v292 = vadd.f32 0.0, %v291
    %293 = vmatprep.mubr.f32.mxu0 0.0
    %294 = vmatmul.mubr.f32.gmra.mxu0 %v154
    %v295 = vpop.f32.mrf.mxu0
    %v296 = vadd.f32 0.0, %v295
    %v297 = vpop.f32.mrf.mxu0
    %v298 = vadd.f32 0.0, %v297
    %299 = vmatprep.mubr.f32.mxu0 0.0
    %300 = vmatmul.mubr.f32.gmra.mxu0 %v157
    %v301 = vpop.f32.mrf.mxu0
    %v302 = vadd.f32 0.0, %v301
    %v303 = vpop.f32.mrf.mxu0
    %v304 = vadd.f32 0.0, %v303
    %305 = vmatprep.mubr.f32.mxu0 0.0
    %306 = vmatmul.mubr.f32.gmra.mxu0 %v160
    %v307 = vpop.f32.mrf.mxu0
    %v308 = vadd.f32 0.0, %v307
    %v309 = vpop.f32.mrf.mxu0
    %v310 = vadd.f32 0.0, %v309
    %311 = vmatprep.mubr.f32.mxu0 0.0
    %312 = vmatmul.mubr.f32.gmra.mxu0 %v163
    %v313 = vpop.f32.mrf.mxu0
    %v314 = vadd.f32 0.0, %v313
    %v315 = vpop.f32.mrf.mxu0
    %v316 = vadd.f32 0.0, %v315
    %317 = vdwg.mxu0
    %318 = vmatprep.subr.mxu0 0.0
    %319 = vmatpush1.msra.mxu0 0.0
    %320 = vmatprep.subr.mxu0 0.0
    %321 = vmatpush1.msra.mxu0 0.0
    %322 = vmatprep.subr.mxu0 0.0
    %323 = vmatpush1.msra.mxu0 0.0
    %324 = vmatprep.subr.mxu0 0.0
    %325 = vmatpush1.msra.mxu0 0.0
    %326 = vmatprep.subr.mxu0 0.0
    %327 = vmatpush1.msra.mxu0 0.0
    %328 = vmatprep.subr.mxu0 0.0
    %329 = vmatpush1.msra.mxu0 0.0
    %330 = vmatprep.subr.mxu0 0.0
    %331 = vmatpush1.msra.mxu0 0.0
    %332 = vmatprep.subr.mxu0 0.0
    %333 = vmatpush1.msra.mxu0 0.0
    %334 = vmatprep.subr.mxu0 0.0
    %335 = vmatpush1.msra.mxu0 0.0
    %336 = vmatprep.subr.mxu0 0.0
    %337 = vmatpush1.msra.mxu0 0.0
    %338 = vmatprep.subr.mxu0 0.0
    %339 = vmatpush1.msra.mxu0 0.0
    %340 = vmatprep.subr.mxu0 0.0
    %341 = vmatpush1.msra.mxu0 0.0
    %342 = vmatprep.subr.mxu0 0.0
    %343 = vmatpush1.msra.mxu0 0.0
    %344 = vmatprep.subr.mxu0 0.0
    %345 = vmatpush1.msra.mxu0 0.0
    %346 = vmatprep.subr.mxu0 0.0
    %347 = vmatpush1.msra.mxu0 %v173
    %348 = vmatprep.subr.mxu0 0.0
    %349 = vmatpush1.msra.mxu0 %v75
    %350 = vmatprep.subr.mxu0 0.0
    %351 = vmatpush2.msra.mxu0 0.0
    %352 = vmatprep.subr.mxu0 0.0
    %353 = vmatpush2.msra.mxu0 0.0
    %354 = vmatprep.subr.mxu0 0.0
    %355 = vmatpush2.msra.mxu0 0.0
    %356 = vmatprep.subr.mxu0 0.0
    %357 = vmatpush2.msra.mxu0 0.0
    %358 = vmatprep.subr.mxu0 0.0
    %359 = vmatpush2.msra.mxu0 0.0
    %360 = vmatprep.subr.mxu0 0.0
    %361 = vmatpush2.msra.mxu0 0.0
    %362 = vmatprep.subr.mxu0 0.0
    %363 = vmatpush2.msra.mxu0 0.0
    %364 = vmatprep.subr.mxu0 0.0
    %365 = vmatpush2.msra.mxu0 0.0
    %366 = vmatprep.subr.mxu0 0.0
    %367 = vmatpush2.msra.mxu0 0.0
    %368 = vmatprep.subr.mxu0 0.0
    %369 = vmatpush2.msra.mxu0 0.0
    %370 = vmatprep.subr.mxu0 0.0
    %371 = vmatpush2.msra.mxu0 0.0
    %372 = vmatprep.subr.mxu0 0.0
    %373 = vmatpush2.msra.mxu0 0.0
    %374 = vmatprep.subr.mxu0 0.0
    %375 = vmatpush2.msra.mxu0 0.0
    %376 = vmatprep.subr.mxu0 0.0
    %377 = vmatpush2.msra.mxu0 0.0
    %378 = vmatprep.subr.mxu0 0.0
    %379 = vmatpush2.msra.mxu0 0.0
    %380 = vmatprep.subr.mxu0 0.0
    %381 = vmatpush2.msra.mxu0 0.0
    %382 = vmatprep.mubr.f32.mxu0 0.0
    %383 = vmatmul.mubr.f32.gmra.mxu0 %v127
    %v384 = vpop.f32.mrf.mxu0
    %v385 = vadd.f32 0.0, %v384
    %v386 = vpop.f32.mrf.mxu0
    %387 = vmatprep.mubr.f32.mxu0 0.0
    %388 = vmatmul.mubr.f32.gmra.mxu0 %v130
    %v389 = vpop.f32.mrf.mxu0
    %v390 = vadd.f32 0.0, %v389
    %v391 = vpop.f32.mrf.mxu0
    %392 = vmatprep.mubr.f32.mxu0 0.0
    %393 = vmatmul.mubr.f32.gmra.mxu0 %v133
    %v394 = vpop.f32.mrf.mxu0
    %v395 = vadd.f32 0.0, %v394
    %v396 = vpop.f32.mrf.mxu0
    %397 = vmatprep.mubr.f32.mxu0 0.0
    %398 = vmatmul.mubr.f32.gmra.mxu0 %v136
    %v399 = vpop.f32.mrf.mxu0
    %v400 = vadd.f32 0.0, %v399
    %v401 = vpop.f32.mrf.mxu0
    %402 = vmatprep.mubr.f32.mxu0 0.0
    %403 = vmatmul.mubr.f32.gmra.mxu0 %v139
    %v404 = vpop.f32.mrf.mxu0
    %v405 = vadd.f32 0.0, %v404
    %v406 = vpop.f32.mrf.mxu0
    %407 = vmatprep.mubr.f32.mxu0 0.0
    %408 = vmatmul.mubr.f32.gmra.mxu0 %v142
    %v409 = vpop.f32.mrf.mxu0
    %v410 = vadd.f32 0.0, %v409
    %v411 = vpop.f32.mrf.mxu0
    %412 = vmatprep.mubr.f32.mxu0 0.0
    %413 = vmatmul.mubr.f32.gmra.mxu0 %v145
    %v414 = vpop.f32.mrf.mxu0
    %v415 = vadd.f32 0.0, %v414
    %v416 = vpop.f32.mrf.mxu0
    %417 = vmatprep.mubr.f32.mxu0 0.0
    %418 = vmatmul.mubr.f32.gmra.mxu0 %v148
    %v419 = vpop.f32.mrf.mxu0
    %v420 = vadd.f32 0.0, %v419
    %v421 = vpop.f32.mrf.mxu0
    %422 = vmatprep.mubr.f32.mxu0 0.0
    %423 = vmatmul.mubr.f32.gmra.mxu0 %v151
    %v424 = vpop.f32.mrf.mxu0
    %v425 = vadd.f32 0.0, %v424
    %v426 = vpop.f32.mrf.mxu0
    %427 = vmatprep.mubr.f32.mxu0 0.0
    %428 = vmatmul.mubr.f32.gmra.mxu0 %v154
    %v429 = vpop.f32.mrf.mxu0
    %v430 = vadd.f32 0.0, %v429
    %v431 = vpop.f32.mrf.mxu0
    %432 = vmatprep.mubr.f32.mxu0 0.0
    %433 = vmatmul.mubr.f32.gmra.mxu0 %v157
    %v434 = vpop.f32.mrf.mxu0
    %v435 = vadd.f32 0.0, %v434
    %v436 = vpop.f32.mrf.mxu0
    %437 = vmatprep.mubr.f32.mxu0 0.0
    %438 = vmatmul.mubr.f32.gmra.mxu0 %v160
    %v439 = vpop.f32.mrf.mxu0
    %v440 = vadd.f32 0.0, %v439
    %v441 = vpop.f32.mrf.mxu0
    %442 = vmatprep.mubr.f32.mxu0 0.0
    %443 = vmatmul.mubr.f32.gmra.mxu0 %v163
    %v444 = vpop.f32.mrf.mxu0
    %v445 = vadd.f32 0.0, %v444
    %v446 = vpop.f32.mrf.mxu0
    %447 = vdwg.mxu0
    %v448 = vmul.f32 %v242, %v34
    %v449 = vmul.f32 %v244, %v35
    %v450 = vmul.f32 %v385, %v36
    %v451 = vmul.f32 %v248, %v37
    %v452 = vmul.f32 %v250, %v38
    %v453 = vmul.f32 %v390, %v39
    %v454 = vmul.f32 %v254, %v40
    %v455 = vmul.f32 %v256, %v41
    %v456 = vmul.f32 %v395, %v42
    %v457 = vmul.f32 %v260, %v43
    %v458 = vmul.f32 %v262, %v44
    %v459 = vmul.f32 %v400, %v45
    %v460 = vmul.f32 %v266, %v46
    %v461 = vmul.f32 %v268, %v47
    %v462 = vmul.f32 %v405, %v48
    %v463 = vmul.f32 %v272, %v49
    %v464 = vmul.f32 %v274, %v50
    %v465 = vmul.f32 %v410, %v51
    %v466 = vmul.f32 %v278, %v52
    %v467 = vmul.f32 %v280, %v53
    %v468 = vmul.f32 %v415, %v54
    %v469 = vmul.f32 %v284, %v55
    %v470 = vmul.f32 %v286, %v56
    %v471 = vmul.f32 %v420, %v57
    %v472 = vmul.f32 %v290, %v58
    %v473 = vmul.f32 %v292, %v59
    %v474 = vmul.f32 %v425, %v60
    %v475 = vmul.f32 %v296, %v61
    %v476 = vmul.f32 %v298, %v62
    %v477 = vmul.f32 %v430, %v63
    %v478 = vmul.f32 %v302, %v64
    %v479 = vmul.f32 %v304, %v65
    %v480 = vmul.f32 %v435, %v66
    %v481 = vmul.f32 %v308, %v67
    %v482 = vmul.f32 %v310, %v68
    %v483 = vmul.f32 %v440, %v69
    %v484 = vmul.f32 %v314, %v70
    %v485 = vmul.f32 %v316, %v71
    %v486 = vmul.f32 %v445, %v72
    %vm487 = vcmask 818176
    %v489 = vsel %vm487, %v124, 0
    %vm491 = vcmask 1043456
    %v493 = vsel %vm491, %v484, 0
    %v496 = vsel %vm491, %v485, 0
    %v499 = vsel %vm491, %v486, 0
    %501 = vmatprep.subr.mxu0 0.0
    %502 = vmatpush1.msra.mxu0 0.0
    %503 = vmatprep.subr.mxu0 0.0
    %504 = vmatpush1.msra.mxu0 0.0
    %505 = vmatprep.subr.mxu0 0.0
    %506 = vmatpush1.msra.mxu0 0.0
    %507 = vmatprep.subr.mxu0 %v496
    %508 = vmatpush1.msra.mxu0 %v493
    %509 = vmatprep.subr.mxu0 %v482
    %510 = vmatpush1.msra.mxu0 %v481
    %511 = vmatprep.subr.mxu0 %v479
    %512 = vmatpush1.msra.mxu0 %v478
    %513 = vmatprep.subr.mxu0 %v476
    %514 = vmatpush1.msra.mxu0 %v475
    %515 = vmatprep.subr.mxu0 %v473
    %516 = vmatpush1.msra.mxu0 %v472
    %517 = vmatprep.subr.mxu0 %v470
    %518 = vmatpush1.msra.mxu0 %v469
    %519 = vmatprep.subr.mxu0 %v467
    %520 = vmatpush1.msra.mxu0 %v466
    %521 = vmatprep.subr.mxu0 %v464
    %522 = vmatpush1.msra.mxu0 %v463
    %523 = vmatprep.subr.mxu0 %v461
    %524 = vmatpush1.msra.mxu0 %v460
    %525 = vmatprep.subr.mxu0 %v458
    %526 = vmatpush1.msra.mxu0 %v457
    %527 = vmatprep.subr.mxu0 %v455
    %528 = vmatpush1.msra.mxu0 %v454
    %529 = vmatprep.subr.mxu0 %v452
    %530 = vmatpush1.msra.mxu0 %v451
    %531 = vmatprep.subr.mxu0 %v449
    %532 = vmatpush1.msra.mxu0 %v448
    %533 = vmatprep.subr.mxu0 0.0
    %534 = vmatpush2.msra.mxu0 0.0
    %535 = vmatprep.subr.mxu0 0.0
    %536 = vmatpush2.msra.mxu0 0.0
    %537 = vmatprep.subr.mxu0 0.0
    %538 = vmatpush2.msra.mxu0 0.0
    %539 = vmatprep.subr.mxu0 0.0
    %540 = vmatpush2.msra.mxu0 0.0
    %541 = vmatprep.subr.mxu0 0.0
    %542 = vmatpush2.msra.mxu0 0.0
    %543 = vmatprep.subr.mxu0 0.0
    %544 = vmatpush2.msra.mxu0 0.0
    %545 = vmatprep.subr.mxu0 0.0
    %546 = vmatpush2.msra.mxu0 0.0
    %547 = vmatprep.subr.mxu0 0.0
    %548 = vmatpush2.msra.mxu0 0.0
    %549 = vmatprep.subr.mxu0 0.0
    %550 = vmatpush2.msra.mxu0 0.0
    %551 = vmatprep.subr.mxu0 0.0
    %552 = vmatpush2.msra.mxu0 0.0
    %553 = vmatprep.subr.mxu0 0.0
    %554 = vmatpush2.msra.mxu0 0.0
    %555 = vmatprep.subr.mxu0 0.0
    %556 = vmatpush2.msra.mxu0 0.0
    %557 = vmatprep.subr.mxu0 0.0
    %558 = vmatpush2.msra.mxu0 0.0
    %559 = vmatprep.subr.mxu0 0.0
    %560 = vmatpush2.msra.mxu0 0.0
    %561 = vmatprep.subr.mxu0 0.0
    %562 = vmatpush2.msra.mxu0 0.0
    %563 = vmatprep.subr.mxu0 0.0
    %564 = vmatpush2.msra.mxu0 0.0
    %565 = vmatprep.mubr.f32.mxu0 0.0
    %566 = vmatmul.mubr.f32.gmra.mxu0 %v489
    %v567 = vpop.f32.mrf.mxu0
    %v568 = vadd.f32 0.0, %v567
    %v569 = vpop.f32.mrf.mxu0
    %v570 = vadd.f32 0.0, %v569
    %571 = vdwg.mxu0
    %572 = vmatprep.subr.mxu0 0.0
    %573 = vmatpush1.msra.mxu0 0.0
    %574 = vmatprep.subr.mxu0 0.0
    %575 = vmatpush1.msra.mxu0 0.0
    %576 = vmatprep.subr.mxu0 0.0
    %577 = vmatpush1.msra.mxu0 0.0
    %578 = vmatprep.subr.mxu0 0.0
    %579 = vmatpush1.msra.mxu0 %v499
    %580 = vmatprep.subr.mxu0 0.0
    %581 = vmatpush1.msra.mxu0 %v483
    %582 = vmatprep.subr.mxu0 0.0
    %583 = vmatpush1.msra.mxu0 %v480
    %584 = vmatprep.subr.mxu0 0.0
    %585 = vmatpush1.msra.mxu0 %v477
    %586 = vmatprep.subr.mxu0 0.0
    %587 = vmatpush1.msra.mxu0 %v474
    %588 = vmatprep.subr.mxu0 0.0
    %589 = vmatpush1.msra.mxu0 %v471
    %590 = vmatprep.subr.mxu0 0.0
    %591 = vmatpush1.msra.mxu0 %v468
    %592 = vmatprep.subr.mxu0 0.0
    %593 = vmatpush1.msra.mxu0 %v465
    %594 = vmatprep.subr.mxu0 0.0
    %595 = vmatpush1.msra.mxu0 %v462
    %596 = vmatprep.subr.mxu0 0.0
    %597 = vmatpush1.msra.mxu0 %v459
    %598 = vmatprep.subr.mxu0 0.0
    %599 = vmatpush1.msra.mxu0 %v456
    %600 = vmatprep.subr.mxu0 0.0
    %601 = vmatpush1.msra.mxu0 %v453
    %602 = vmatprep.subr.mxu0 0.0
    %603 = vmatpush1.msra.mxu0 %v450
    %604 = vmatprep.subr.mxu0 0.0
    %605 = vmatpush2.msra.mxu0 0.0
    %606 = vmatprep.subr.mxu0 0.0
    %607 = vmatpush2.msra.mxu0 0.0
    %608 = vmatprep.subr.mxu0 0.0
    %609 = vmatpush2.msra.mxu0 0.0
    %610 = vmatprep.subr.mxu0 0.0
    %611 = vmatpush2.msra.mxu0 0.0
    %612 = vmatprep.subr.mxu0 0.0
    %613 = vmatpush2.msra.mxu0 0.0
    %614 = vmatprep.subr.mxu0 0.0
    %615 = vmatpush2.msra.mxu0 0.0
    %616 = vmatprep.subr.mxu0 0.0
    %617 = vmatpush2.msra.mxu0 0.0
    %618 = vmatprep.subr.mxu0 0.0
    %619 = vmatpush2.msra.mxu0 0.0
    %620 = vmatprep.subr.mxu0 0.0
    %621 = vmatpush2.msra.mxu0 0.0
    %622 = vmatprep.subr.mxu0 0.0
    %623 = vmatpush2.msra.mxu0 0.0
    %624 = vmatprep.subr.mxu0 0.0
    %625 = vmatpush2.msra.mxu0 0.0
    %626 = vmatprep.subr.mxu0 0.0
    %627 = vmatpush2.msra.mxu0 0.0
    %628 = vmatprep.subr.mxu0 0.0
    %629 = vmatpush2.msra.mxu0 0.0
    %630 = vmatprep.subr.mxu0 0.0
    %631 = vmatpush2.msra.mxu0 0.0
    %632 = vmatprep.subr.mxu0 0.0
    %633 = vmatpush2.msra.mxu0 0.0
    %634 = vmatprep.subr.mxu0 0.0
    %635 = vmatpush2.msra.mxu0 0.0
    %636 = vmatprep.mubr.f32.mxu0 0.0
    %637 = vmatmul.mubr.f32.gmra.mxu0 %v489
    %v638 = vpop.f32.mrf.mxu0
    %v639 = vadd.f32 0.0, %v638
    %v640 = vpop.f32.mrf.mxu0
    %641 = vdwg.mxu0
    %v642 = vmul.f32 %v34, %v34
    %v643 = vmul.f32 %v35, %v35
    %v644 = vmul.f32 %v36, %v36
    %v645 = vmul.f32 %v37, %v37
    %v646 = vmul.f32 %v38, %v38
    %v647 = vmul.f32 %v39, %v39
    %v648 = vmul.f32 %v40, %v40
    %v649 = vmul.f32 %v41, %v41
    %v650 = vmul.f32 %v42, %v42
    %v651 = vmul.f32 %v43, %v43
    %v652 = vmul.f32 %v44, %v44
    %v653 = vmul.f32 %v45, %v45
    %v654 = vmul.f32 %v46, %v46
    %v655 = vmul.f32 %v47, %v47
    %v656 = vmul.f32 %v48, %v48
    %v657 = vmul.f32 %v49, %v49
    %v658 = vmul.f32 %v50, %v50
    %v659 = vmul.f32 %v51, %v51
    %v660 = vmul.f32 %v52, %v52
    %v661 = vmul.f32 %v53, %v53
    %v662 = vmul.f32 %v54, %v54
    %v663 = vmul.f32 %v55, %v55
    %v664 = vmul.f32 %v56, %v56
    %v665 = vmul.f32 %v57, %v57
    %v666 = vmul.f32 %v58, %v58
    %v667 = vmul.f32 %v59, %v59
    %v668 = vmul.f32 %v60, %v60
    %v669 = vmul.f32 %v61, %v61
    %v670 = vmul.f32 %v62, %v62
    %v671 = vmul.f32 %v63, %v63
    %v672 = vmul.f32 %v64, %v64
    %v673 = vmul.f32 %v65, %v65
    %v674 = vmul.f32 %v66, %v66
    %v675 = vmul.f32 %v67, %v67
    %v676 = vmul.f32 %v68, %v68
    %v677 = vmul.f32 %v69, %v69
    %v678 = vmul.f32 %v70, %v70
    %v679 = vmul.f32 %v71, %v71
    %v680 = vmul.f32 %v72, %v72
    %v682 = vsel %vm491, %v678, 0
    %v685 = vsel %vm491, %v679, 0
    %v688 = vsel %vm491, %v680, 0
    %690 = vmatprep.subr.mxu0 0.0
    %691 = vmatpush1.msra.mxu0 0.0
    %692 = vmatprep.subr.mxu0 0.0
    %693 = vmatpush1.msra.mxu0 0.0
    %694 = vmatprep.subr.mxu0 0.0
    %695 = vmatpush1.msra.mxu0 0.0
    %696 = vmatprep.subr.mxu0 %v685
    %697 = vmatpush1.msra.mxu0 %v682
    %698 = vmatprep.subr.mxu0 %v676
    %699 = vmatpush1.msra.mxu0 %v675
    %700 = vmatprep.subr.mxu0 %v673
    %701 = vmatpush1.msra.mxu0 %v672
    %702 = vmatprep.subr.mxu0 %v670
    %703 = vmatpush1.msra.mxu0 %v669
    %704 = vmatprep.subr.mxu0 %v667
    %705 = vmatpush1.msra.mxu0 %v666
    %706 = vmatprep.subr.mxu0 %v664
    %707 = vmatpush1.msra.mxu0 %v663
    %708 = vmatprep.subr.mxu0 %v661
    %709 = vmatpush1.msra.mxu0 %v660
    %710 = vmatprep.subr.mxu0 %v658
    %711 = vmatpush1.msra.mxu0 %v657
    %712 = vmatprep.subr.mxu0 %v655
    %713 = vmatpush1.msra.mxu0 %v654
    %714 = vmatprep.subr.mxu0 %v652
    %715 = vmatpush1.msra.mxu0 %v651
    %716 = vmatprep.subr.mxu0 %v649
    %717 = vmatpush1.msra.mxu0 %v648
    %718 = vmatprep.subr.mxu0 %v646
    %719 = vmatpush1.msra.mxu0 %v645
    %720 = vmatprep.subr.mxu0 %v643
    %721 = vmatpush1.msra.mxu0 %v642
    %722 = vmatprep.subr.mxu0 0.0
    %723 = vmatpush2.msra.mxu0 0.0
    %724 = vmatprep.subr.mxu0 0.0
    %725 = vmatpush2.msra.mxu0 0.0
    %726 = vmatprep.subr.mxu0 0.0
    %727 = vmatpush2.msra.mxu0 0.0
    %728 = vmatprep.subr.mxu0 0.0
    %729 = vmatpush2.msra.mxu0 0.0
    %730 = vmatprep.subr.mxu0 0.0
    %731 = vmatpush2.msra.mxu0 0.0
    %732 = vmatprep.subr.mxu0 0.0
    %733 = vmatpush2.msra.mxu0 0.0
    %734 = vmatprep.subr.mxu0 0.0
    %735 = vmatpush2.msra.mxu0 0.0
    %736 = vmatprep.subr.mxu0 0.0
    %737 = vmatpush2.msra.mxu0 0.0
    %738 = vmatprep.subr.mxu0 0.0
    %739 = vmatpush2.msra.mxu0 0.0
    %740 = vmatprep.subr.mxu0 0.0
    %741 = vmatpush2.msra.mxu0 0.0
    %742 = vmatprep.subr.mxu0 0.0
    %743 = vmatpush2.msra.mxu0 0.0
    %744 = vmatprep.subr.mxu0 0.0
    %745 = vmatpush2.msra.mxu0 0.0
    %746 = vmatprep.subr.mxu0 0.0
    %747 = vmatpush2.msra.mxu0 0.0
    %748 = vmatprep.subr.mxu0 0.0
    %749 = vmatpush2.msra.mxu0 0.0
    %750 = vmatprep.subr.mxu0 0.0
    %751 = vmatpush2.msra.mxu0 0.0
    %752 = vmatprep.subr.mxu0 0.0
    %753 = vmatpush2.msra.mxu0 0.0
    %754 = vmatprep.mubr.f32.mxu0 0.0
    %755 = vmatmul.mubr.f32.gmra.mxu0 %v489
    %v756 = vpop.f32.mrf.mxu0
    %v757 = vadd.f32 0.0, %v756
    %v758 = vpop.f32.mrf.mxu0
    %v759 = vadd.f32 0.0, %v758
    %760 = vdwg.mxu0
    %761 = vmatprep.subr.mxu0 0.0
    %762 = vmatpush1.msra.mxu0 0.0
    %763 = vmatprep.subr.mxu0 0.0
    %764 = vmatpush1.msra.mxu0 0.0
    %765 = vmatprep.subr.mxu0 0.0
    %766 = vmatpush1.msra.mxu0 0.0
    %767 = vmatprep.subr.mxu0 0.0
    %768 = vmatpush1.msra.mxu0 %v688
    %769 = vmatprep.subr.mxu0 0.0
    %770 = vmatpush1.msra.mxu0 %v677
    %771 = vmatprep.subr.mxu0 0.0
    %772 = vmatpush1.msra.mxu0 %v674
    %773 = vmatprep.subr.mxu0 0.0
    %774 = vmatpush1.msra.mxu0 %v671
    %775 = vmatprep.subr.mxu0 0.0
    %776 = vmatpush1.msra.mxu0 %v668
    %777 = vmatprep.subr.mxu0 0.0
    %778 = vmatpush1.msra.mxu0 %v665
    %779 = vmatprep.subr.mxu0 0.0
    %780 = vmatpush1.msra.mxu0 %v662
    %781 = vmatprep.subr.mxu0 0.0
    %782 = vmatpush1.msra.mxu0 %v659
    %783 = vmatprep.subr.mxu0 0.0
    %784 = vmatpush1.msra.mxu0 %v656
    %785 = vmatprep.subr.mxu0 0.0
    %786 = vmatpush1.msra.mxu0 %v653
    %787 = vmatprep.subr.mxu0 0.0
    %788 = vmatpush1.msra.mxu0 %v650
    %789 = vmatprep.subr.mxu0 0.0
    %790 = vmatpush1.msra.mxu0 %v647
    %791 = vmatprep.subr.mxu0 0.0
    %792 = vmatpush1.msra.mxu0 %v644
    %793 = vmatprep.subr.mxu0 0.0
    %794 = vmatpush2.msra.mxu0 0.0
    %795 = vmatprep.subr.mxu0 0.0
    %796 = vmatpush2.msra.mxu0 0.0
    %797 = vmatprep.subr.mxu0 0.0
    %798 = vmatpush2.msra.mxu0 0.0
    %799 = vmatprep.subr.mxu0 0.0
    %800 = vmatpush2.msra.mxu0 0.0
    %801 = vmatprep.subr.mxu0 0.0
    %802 = vmatpush2.msra.mxu0 0.0
    %803 = vmatprep.subr.mxu0 0.0
    %804 = vmatpush2.msra.mxu0 0.0
    %805 = vmatprep.subr.mxu0 0.0
    %806 = vmatpush2.msra.mxu0 0.0
    %807 = vmatprep.subr.mxu0 0.0
    %808 = vmatpush2.msra.mxu0 0.0
    %809 = vmatprep.subr.mxu0 0.0
    %810 = vmatpush2.msra.mxu0 0.0
    %811 = vmatprep.subr.mxu0 0.0
    %812 = vmatpush2.msra.mxu0 0.0
    %813 = vmatprep.subr.mxu0 0.0
    %814 = vmatpush2.msra.mxu0 0.0
    %815 = vmatprep.subr.mxu0 0.0
    %816 = vmatpush2.msra.mxu0 0.0
    %817 = vmatprep.subr.mxu0 0.0
    %818 = vmatpush2.msra.mxu0 0.0
    %819 = vmatprep.subr.mxu0 0.0
    %820 = vmatpush2.msra.mxu0 0.0
    %821 = vmatprep.subr.mxu0 0.0
    %822 = vmatpush2.msra.mxu0 0.0
    %823 = vmatprep.subr.mxu0 0.0
    %824 = vmatpush2.msra.mxu0 0.0
    %825 = vmatprep.mubr.f32.mxu0 0.0
    %826 = vmatmul.mubr.f32.gmra.mxu0 %v489
    %v827 = vpop.f32.mrf.mxu0
    %v828 = vadd.f32 0.0, %v827
    %v829 = vpop.f32.mrf.mxu0
    %830 = vdwg.mxu0
    %v831 = vmul.f32 %v21, %v21
    %v832 = vmul.f32 %v22, %v22
    %v833 = vmul.f32 %v23, %v23
    %v834 = vmul.f32 %v24, %v24
    %v835 = vmul.f32 %v25, %v25
    %v836 = vmul.f32 %v26, %v26
    %v837 = vmul.f32 %v27, %v27
    %v838 = vmul.f32 %v28, %v28
    %v839 = vmul.f32 %v29, %v29
    %v840 = vmul.f32 %v30, %v30
    %v841 = vmul.f32 %v31, %v31
    %v842 = vmul.f32 %v32, %v32
    %v843 = vmul.f32 %v33, %v33
    %v845 = vsel %vm491, %v843, 0
    %847 = vmatprep.subr.mxu0 0.0
    %848 = vmatpush1.msra.mxu0 0.0
    %849 = vmatprep.subr.mxu0 0.0
    %850 = vmatpush1.msra.mxu0 0.0
    %851 = vmatprep.subr.mxu0 0.0
    %852 = vmatpush1.msra.mxu0 0.0
    %853 = vmatprep.subr.mxu0 0.0
    %854 = vmatpush1.msra.mxu0 %v845
    %855 = vmatprep.subr.mxu0 0.0
    %856 = vmatpush1.msra.mxu0 %v842
    %857 = vmatprep.subr.mxu0 0.0
    %858 = vmatpush1.msra.mxu0 %v841
    %859 = vmatprep.subr.mxu0 0.0
    %860 = vmatpush1.msra.mxu0 %v840
    %861 = vmatprep.subr.mxu0 0.0
    %862 = vmatpush1.msra.mxu0 %v839
    %863 = vmatprep.subr.mxu0 0.0
    %864 = vmatpush1.msra.mxu0 %v838
    %865 = vmatprep.subr.mxu0 0.0
    %866 = vmatpush1.msra.mxu0 %v837
    %867 = vmatprep.subr.mxu0 0.0
    %868 = vmatpush1.msra.mxu0 %v836
    %869 = vmatprep.subr.mxu0 0.0
    %870 = vmatpush1.msra.mxu0 %v835
    %871 = vmatprep.subr.mxu0 0.0
    %872 = vmatpush1.msra.mxu0 %v834
    %873 = vmatprep.subr.mxu0 0.0
    %874 = vmatpush1.msra.mxu0 %v833
    %875 = vmatprep.subr.mxu0 0.0
    %876 = vmatpush1.msra.mxu0 %v832
    %877 = vmatprep.subr.mxu0 0.0
    %878 = vmatpush1.msra.mxu0 %v831
    %879 = vmatprep.subr.mxu0 0.0
    %880 = vmatpush2.msra.mxu0 0.0
    %881 = vmatprep.subr.mxu0 0.0
    %882 = vmatpush2.msra.mxu0 0.0
    %883 = vmatprep.subr.mxu0 0.0
    %884 = vmatpush2.msra.mxu0 0.0
    %885 = vmatprep.subr.mxu0 0.0
    %886 = vmatpush2.msra.mxu0 0.0
    %887 = vmatprep.subr.mxu0 0.0
    %888 = vmatpush2.msra.mxu0 0.0
    %889 = vmatprep.subr.mxu0 0.0
    %890 = vmatpush2.msra.mxu0 0.0
    %891 = vmatprep.subr.mxu0 0.0
    %892 = vmatpush2.msra.mxu0 0.0
    %893 = vmatprep.subr.mxu0 0.0
    %894 = vmatpush2.msra.mxu0 0.0
    %895 = vmatprep.subr.mxu0 0.0
    %896 = vmatpush2.msra.mxu0 0.0
    %897 = vmatprep.subr.mxu0 0.0
    %898 = vmatpush2.msra.mxu0 0.0
    %899 = vmatprep.subr.mxu0 0.0
    %900 = vmatpush2.msra.mxu0 0.0
    %901 = vmatprep.subr.mxu0 0.0
    %902 = vmatpush2.msra.mxu0 0.0
    %903 = vmatprep.subr.mxu0 0.0
    %904 = vmatpush2.msra.mxu0 0.0
    %905 = vmatprep.subr.mxu0 0.0
    %906 = vmatpush2.msra.mxu0 0.0
    %907 = vmatprep.subr.mxu0 0.0
    %908 = vmatpush2.msra.mxu0 0.0
    %909 = vmatprep.subr.mxu0 0.0
    %910 = vmatpush2.msra.mxu0 0.0
    %911 = vmatprep.mubr.f32.mxu0 0.0
    %912 = vmatmul.mubr.f32.gmra.mxu0 %v489
    %v913 = vpop.f32.mrf.mxu0
    %v914 = vadd.f32 0.0, %v913
    %v915 = vpop.f32.mrf.mxu0
    %916 = vdwg.mxu0
    %v918 = vsel %vm125, %v914, 0
    %920 = vmatprep.subr.mxu0 0.0
    %921 = vmatpush1.msra.mxu0 0.0
    %922 = vmatprep.subr.mxu0 0.0
    %923 = vmatpush1.msra.mxu0 0.0
    %924 = vmatprep.subr.mxu0 0.0
    %925 = vmatpush1.msra.mxu0 0.0
    %926 = vmatprep.subr.mxu0 0.0
    %927 = vmatpush1.msra.mxu0 0.0
    %928 = vmatprep.subr.mxu0 0.0
    %929 = vmatpush1.msra.mxu0 0.0
    %930 = vmatprep.subr.mxu0 0.0
    %931 = vmatpush1.msra.mxu0 0.0
    %932 = vmatprep.subr.mxu0 0.0
    %933 = vmatpush1.msra.mxu0 0.0
    %934 = vmatprep.subr.mxu0 0.0
    %935 = vmatpush1.msra.mxu0 0.0
    %936 = vmatprep.subr.mxu0 0.0
    %937 = vmatpush1.msra.mxu0 0.0
    %938 = vmatprep.subr.mxu0 0.0
    %939 = vmatpush1.msra.mxu0 0.0
    %940 = vmatprep.subr.mxu0 0.0
    %941 = vmatpush1.msra.mxu0 0.0
    %942 = vmatprep.subr.mxu0 0.0
    %943 = vmatpush1.msra.mxu0 0.0
    %944 = vmatprep.subr.mxu0 0.0
    %945 = vmatpush1.msra.mxu0 0.0
    %946 = vmatprep.subr.mxu0 0.0
    %947 = vmatpush1.msra.mxu0 0.0
    %948 = vmatprep.subr.mxu0 %v170
    %949 = vmatpush1.msra.mxu0 %v167
    %950 = vmatprep.subr.mxu0 %v74
    %951 = vmatpush1.msra.mxu0 %v73
    %952 = vmatprep.subr.mxu0 0.0
    %953 = vmatpush2.msra.mxu0 0.0
    %954 = vmatprep.subr.mxu0 0.0
    %955 = vmatpush2.msra.mxu0 0.0
    %956 = vmatprep.subr.mxu0 0.0
    %957 = vmatpush2.msra.mxu0 0.0
    %958 = vmatprep.subr.mxu0 0.0
    %959 = vmatpush2.msra.mxu0 0.0
    %960 = vmatprep.subr.mxu0 0.0
    %961 = vmatpush2.msra.mxu0 0.0
    %962 = vmatprep.subr.mxu0 0.0
    %963 = vmatpush2.msra.mxu0 0.0
    %964 = vmatprep.subr.mxu0 0.0
    %965 = vmatpush2.msra.mxu0 0.0
    %966 = vmatprep.subr.mxu0 0.0
    %967 = vmatpush2.msra.mxu0 0.0
    %968 = vmatprep.subr.mxu0 0.0
    %969 = vmatpush2.msra.mxu0 0.0
    %970 = vmatprep.subr.mxu0 0.0
    %971 = vmatpush2.msra.mxu0 0.0
    %972 = vmatprep.subr.mxu0 0.0
    %973 = vmatpush2.msra.mxu0 0.0
    %974 = vmatprep.subr.mxu0 0.0
    %975 = vmatpush2.msra.mxu0 0.0
    %976 = vmatprep.subr.mxu0 0.0
    %977 = vmatpush2.msra.mxu0 0.0
    %978 = vmatprep.subr.mxu0 0.0
    %979 = vmatpush2.msra.mxu0 0.0
    %980 = vmatprep.subr.mxu0 0.0
    %981 = vmatpush2.msra.mxu0 0.0
    %982 = vmatprep.subr.mxu0 0.0
    %983 = vmatpush2.msra.mxu0 0.0
    %984 = vmatprep.mubr.f32.mxu0 0.0
    %985 = vmatmul.mubr.f32.gmra.mxu0 %v918
    %v986 = vpop.f32.mrf.mxu0
    %v987 = vadd.f32 0.0, %v986
    %v988 = vpop.f32.mrf.mxu0
    %v989 = vadd.f32 0.0, %v988
    %990 = vdwg.mxu0
    %991 = vmatprep.subr.mxu0 0.0
    %992 = vmatpush1.msra.mxu0 0.0
    %993 = vmatprep.subr.mxu0 0.0
    %994 = vmatpush1.msra.mxu0 0.0
    %995 = vmatprep.subr.mxu0 0.0
    %996 = vmatpush1.msra.mxu0 0.0
    %997 = vmatprep.subr.mxu0 0.0
    %998 = vmatpush1.msra.mxu0 0.0
    %999 = vmatprep.subr.mxu0 0.0
    %1000 = vmatpush1.msra.mxu0 0.0
    %1001 = vmatprep.subr.mxu0 0.0
    %1002 = vmatpush1.msra.mxu0 0.0
    %1003 = vmatprep.subr.mxu0 0.0
    %1004 = vmatpush1.msra.mxu0 0.0
    %1005 = vmatprep.subr.mxu0 0.0
    %1006 = vmatpush1.msra.mxu0 0.0
    %1007 = vmatprep.subr.mxu0 0.0
    %1008 = vmatpush1.msra.mxu0 0.0
    %1009 = vmatprep.subr.mxu0 0.0
    %1010 = vmatpush1.msra.mxu0 0.0
    %1011 = vmatprep.subr.mxu0 0.0
    %1012 = vmatpush1.msra.mxu0 0.0
    %1013 = vmatprep.subr.mxu0 0.0
    %1014 = vmatpush1.msra.mxu0 0.0
    %1015 = vmatprep.subr.mxu0 0.0
    %1016 = vmatpush1.msra.mxu0 0.0
    %1017 = vmatprep.subr.mxu0 0.0
    %1018 = vmatpush1.msra.mxu0 0.0
    %1019 = vmatprep.subr.mxu0 0.0
    %1020 = vmatpush1.msra.mxu0 %v173
    %1021 = vmatprep.subr.mxu0 0.0
    %1022 = vmatpush1.msra.mxu0 %v75
    %1023 = vmatprep.subr.mxu0 0.0
    %1024 = vmatpush2.msra.mxu0 0.0
    %1025 = vmatprep.subr.mxu0 0.0
    %1026 = vmatpush2.msra.mxu0 0.0
    %1027 = vmatprep.subr.mxu0 0.0
    %1028 = vmatpush2.msra.mxu0 0.0
    %1029 = vmatprep.subr.mxu0 0.0
    %1030 = vmatpush2.msra.mxu0 0.0
    %1031 = vmatprep.subr.mxu0 0.0
    %1032 = vmatpush2.msra.mxu0 0.0
    %1033 = vmatprep.subr.mxu0 0.0
    %1034 = vmatpush2.msra.mxu0 0.0
    %1035 = vmatprep.subr.mxu0 0.0
    %1036 = vmatpush2.msra.mxu0 0.0
    %1037 = vmatprep.subr.mxu0 0.0
    %1038 = vmatpush2.msra.mxu0 0.0
    %1039 = vmatprep.subr.mxu0 0.0
    %1040 = vmatpush2.msra.mxu0 0.0
    %1041 = vmatprep.subr.mxu0 0.0
    %1042 = vmatpush2.msra.mxu0 0.0
    %1043 = vmatprep.subr.mxu0 0.0
    %1044 = vmatpush2.msra.mxu0 0.0
    %1045 = vmatprep.subr.mxu0 0.0
    %1046 = vmatpush2.msra.mxu0 0.0
    %1047 = vmatprep.subr.mxu0 0.0
    %1048 = vmatpush2.msra.mxu0 0.0
    %1049 = vmatprep.subr.mxu0 0.0
    %1050 = vmatpush2.msra.mxu0 0.0
    %1051 = vmatprep.subr.mxu0 0.0
    %1052 = vmatpush2.msra.mxu0 0.0
    %1053 = vmatprep.subr.mxu0 0.0
    %1054 = vmatpush2.msra.mxu0 0.0
    %1055 = vmatprep.mubr.f32.mxu0 0.0
    %1056 = vmatmul.mubr.f32.gmra.mxu0 %v918
    %v1057 = vpop.f32.mrf.mxu0
    %v1058 = vadd.f32 0.0, %v1057
    %v1059 = vpop.f32.mrf.mxu0
    %1060 = vdwg.mxu0
    %v1061 = vmul.f32 %v757, %v987
    %v1062 = vmul.f32 %v759, %v989
    %v1063 = vmul.f32 %v828, %v1058
    %v1064 = vrsqrt.pop %v1061
    %v1065 = vrsqrt.pop %v1062
    %v1066 = vrsqrt.pop %v1063
    %v1067 = vmul.f32 %v568, %v1064
    %v1068 = vmul.f32 %v570, %v1065
    %v1069 = vmul.f32 %v639, %v1066
    %vm1070 = vcmask 850944
    %v1072 = vsel %vm1070, %v1069, 0
    %1074 = vmatprep.subr.mxu0 0.0
    %1075 = vmatpush1.msra.mxu0 %v94
    %1076 = vmatprep.subr.mxu0 0.0
    %1077 = vmatpush1.msra.mxu0 %v93
    %1078 = vmatprep.subr.mxu0 0.0
    %1079 = vmatpush1.msra.mxu0 %v92
    %1080 = vmatprep.subr.mxu0 0.0
    %1081 = vmatpush1.msra.mxu0 %v91
    %1082 = vmatprep.subr.mxu0 0.0
    %1083 = vmatpush1.msra.mxu0 %v90
    %1084 = vmatprep.subr.mxu0 0.0
    %1085 = vmatpush1.msra.mxu0 %v89
    %1086 = vmatprep.subr.mxu0 0.0
    %1087 = vmatpush1.msra.mxu0 %v88
    %1088 = vmatprep.subr.mxu0 0.0
    %1089 = vmatpush1.msra.mxu0 %v87
    %1090 = vmatprep.subr.mxu0 0.0
    %1091 = vmatpush1.msra.mxu0 %v86
    %1092 = vmatprep.subr.mxu0 0.0
    %1093 = vmatpush1.msra.mxu0 %v85
    %1094 = vmatprep.subr.mxu0 0.0
    %1095 = vmatpush1.msra.mxu0 %v84
    %1096 = vmatprep.subr.mxu0 0.0
    %1097 = vmatpush1.msra.mxu0 %v83
    %1098 = vmatprep.subr.mxu0 0.0
    %1099 = vmatpush1.msra.mxu0 %v82
    %1100 = vmatprep.subr.mxu0 0.0
    %1101 = vmatpush1.msra.mxu0 %v81
    %1102 = vmatprep.subr.mxu0 0.0
    %1103 = vmatpush1.msra.mxu0 %v80
    %1104 = vmatprep.subr.mxu0 0.0
    %1105 = vmatpush1.msra.mxu0 %v79
    %1106 = vmatprep.subr.mxu0 0.0
    %1107 = vmatpush2.msra.mxu0 %v110
    %1108 = vmatprep.subr.mxu0 0.0
    %1109 = vmatpush2.msra.mxu0 %v109
    %1110 = vmatprep.subr.mxu0 0.0
    %1111 = vmatpush2.msra.mxu0 %v108
    %1112 = vmatprep.subr.mxu0 0.0
    %1113 = vmatpush2.msra.mxu0 %v107
    %1114 = vmatprep.subr.mxu0 0.0
    %1115 = vmatpush2.msra.mxu0 %v106
    %1116 = vmatprep.subr.mxu0 0.0
    %1117 = vmatpush2.msra.mxu0 %v105
    %1118 = vmatprep.subr.mxu0 0.0
    %1119 = vmatpush2.msra.mxu0 %v104
    %1120 = vmatprep.subr.mxu0 0.0
    %1121 = vmatpush2.msra.mxu0 %v103
    %1122 = vmatprep.subr.mxu0 0.0
    %1123 = vmatpush2.msra.mxu0 %v102
    %1124 = vmatprep.subr.mxu0 0.0
    %1125 = vmatpush2.msra.mxu0 %v101
    %1126 = vmatprep.subr.mxu0 0.0
    %1127 = vmatpush2.msra.mxu0 %v100
    %1128 = vmatprep.subr.mxu0 0.0
    %1129 = vmatpush2.msra.mxu0 %v99
    %1130 = vmatprep.subr.mxu0 0.0
    %1131 = vmatpush2.msra.mxu0 %v98
    %1132 = vmatprep.subr.mxu0 0.0
    %1133 = vmatpush2.msra.mxu0 %v97
    %1134 = vmatprep.subr.mxu0 0.0
    %1135 = vmatpush2.msra.mxu0 %v96
    %1136 = vmatprep.subr.mxu0 0.0
    %1137 = vmatpush2.msra.mxu0 %v95
    %1138 = vmatprep.mubr.f32.mxu0 %v1068
    %1139 = vmatmul.mubr.f32.gmra.mxu0 %v1067
    %v1140 = vpop.f32.mrf.mxu0
    %v1141 = vadd.f32 0.0, %v1140
    %v1142 = vpop.f32.mrf.mxu0
    %1143 = vdwg.mxu0
    %1144 = vmatprep.subr.mxu0 0.0
    %1145 = vmatpush1.msra.mxu0 0.0
    %1146 = vmatprep.subr.mxu0 0.0
    %1147 = vmatpush1.msra.mxu0 0.0
    %1148 = vmatprep.subr.mxu0 0.0
    %1149 = vmatpush1.msra.mxu0 0.0
    %1150 = vmatprep.subr.mxu0 0.0
    %1151 = vmatpush1.msra.mxu0 %v123
    %1152 = vmatprep.subr.mxu0 0.0
    %1153 = vmatpush1.msra.mxu0 %v122
    %1154 = vmatprep.subr.mxu0 0.0
    %1155 = vmatpush1.msra.mxu0 %v121
    %1156 = vmatprep.subr.mxu0 0.0
    %1157 = vmatpush1.msra.mxu0 %v120
    %1158 = vmatprep.subr.mxu0 0.0
    %1159 = vmatpush1.msra.mxu0 %v119
    %1160 = vmatprep.subr.mxu0 0.0
    %1161 = vmatpush1.msra.mxu0 %v118
    %1162 = vmatprep.subr.mxu0 0.0
    %1163 = vmatpush1.msra.mxu0 %v117
    %1164 = vmatprep.subr.mxu0 0.0
    %1165 = vmatpush1.msra.mxu0 %v116
    %1166 = vmatprep.subr.mxu0 0.0
    %1167 = vmatpush1.msra.mxu0 %v115
    %1168 = vmatprep.subr.mxu0 0.0
    %1169 = vmatpush1.msra.mxu0 %v114
    %1170 = vmatprep.subr.mxu0 0.0
    %1171 = vmatpush1.msra.mxu0 %v113
    %1172 = vmatprep.subr.mxu0 0.0
    %1173 = vmatpush1.msra.mxu0 %v112
    %1174 = vmatprep.subr.mxu0 0.0
    %1175 = vmatpush1.msra.mxu0 %v111
    %1176 = vmatprep.subr.mxu0 0.0
    %1177 = vmatpush2.msra.mxu0 0.0
    %1178 = vmatprep.subr.mxu0 0.0
    %1179 = vmatpush2.msra.mxu0 0.0
    %1180 = vmatprep.subr.mxu0 0.0
    %1181 = vmatpush2.msra.mxu0 0.0
    %1182 = vmatprep.subr.mxu0 0.0
    %1183 = vmatpush2.msra.mxu0 0.0
    %1184 = vmatprep.subr.mxu0 0.0
    %1185 = vmatpush2.msra.mxu0 0.0
    %1186 = vmatprep.subr.mxu0 0.0
    %1187 = vmatpush2.msra.mxu0 0.0
    %1188 = vmatprep.subr.mxu0 0.0
    %1189 = vmatpush2.msra.mxu0 0.0
    %1190 = vmatprep.subr.mxu0 0.0
    %1191 = vmatpush2.msra.mxu0 0.0
    %1192 = vmatprep.subr.mxu0 0.0
    %1193 = vmatpush2.msra.mxu0 0.0
    %1194 = vmatprep.subr.mxu0 0.0
    %1195 = vmatpush2.msra.mxu0 0.0
    %1196 = vmatprep.subr.mxu0 0.0
    %1197 = vmatpush2.msra.mxu0 0.0
    %1198 = vmatprep.subr.mxu0 0.0
    %1199 = vmatpush2.msra.mxu0 0.0
    %1200 = vmatprep.subr.mxu0 0.0
    %1201 = vmatpush2.msra.mxu0 0.0
    %1202 = vmatprep.subr.mxu0 0.0
    %1203 = vmatpush2.msra.mxu0 0.0
    %1204 = vmatprep.subr.mxu0 0.0
    %1205 = vmatpush2.msra.mxu0 0.0
    %1206 = vmatprep.subr.mxu0 0.0
    %1207 = vmatpush2.msra.mxu0 0.0
    %1208 = vmatprep.mubr.f32.mxu0 0.0
    %1209 = vmatmul.mubr.f32.gmra.mxu0 %v1072
    %v1210 = vpop.f32.mrf.mxu0
    %v1211 = vadd.f32 %v1141, %v1210
    %v1212 = vpop.f32.mrf.mxu0
    %1213 = vdwg.mxu0
    %v1214 = vmul.f32 %v1211, 0.11111111
    %vm1215 = vcmask 320512
    %1216 = vst.msk [vmem:[#allocation2] sm:$0x3] %vm1215, %v1214
    // Predicated region
    $region22: #{tpu_custom_call.1} parent=1 // pred_check
      _
    $region23: #{tpu_custom_call.1} parent=1 // pred_check_branch
      %1218 = sbr.rel (0) target = $region25
    $region24: #{tpu_custom_call.1} parent=1 // pred_region
      %s1220 = ssub.s32 32, 32
      %1221 = vsyncadd [#allocation3], %s1220
      %s1223 = sshll.u32 [#allocation2], 4
      %s1224 = int_to_ptr.vmem [resolvable:$true] %s1223
      %1226 = dma.vmem_to_hbm [thread:$0]  %s1224, 32, %s5, [#allocation3]
    $region25: #{tpu_custom_call.1} parent=1 // pred_fallthru
      _
    // Predicated region
    $region26: #{tpu_custom_call.1} parent=1 // pred_check
      _
    $region27: #{tpu_custom_call.1} parent=1 // pred_check_branch
      %1228 = sbr.rel (0) target = $region29
    $region28: #{tpu_custom_call.1} parent=1 // pred_region
      %1229 = dma.done [#allocation3], 32
    $region29: #{tpu_custom_call.1} parent=1 // pred_fallthru
      _
    %1230 = vsyncpa [#allocation3], 1

</llo_original>
